<compile_context>
chip_gen: v5e
topology: v5e:2x2
jax: 0.10.0
libtpu: 0.0.40
codegen_flags: <defaults>
</compile_context>

<pallas_src>
import jax
import jax.numpy as jnp
from jax.experimental import pallas as pl
from jax.experimental.pallas import tpu as pltpu

INPUT_NODE = 2
OUTPUT_NODE = 1
NUM_HID = 32
BATCH = 16

# Column layout of the packed (H_pad, 128) parameter slab (weights live along
# the sublane axis so the kernel gets (H, 1) columns without any transpose).
_COL_W1R, _COL_W1A, _COL_B1, _COL_W2, _COL_B2 = 0, 1, 2, 3, 4


def _round_up(n, m):
    return ((n + m - 1) // m) * m


def polarnet_kernel(params_ref, inp_ref, out_ref):
    """One batch tile (batch along lanes), fully in VMEM; VPU/EUP/XLU only."""
    p = params_ref[...]                       # (Hp, 128) param slab, resident
    w1r = p[:, _COL_W1R:_COL_W1R + 1]         # (Hp, 1)  lin1.weight[:, 0]
    w1a = p[:, _COL_W1A:_COL_W1A + 1]         # (Hp, 1)  lin1.weight[:, 1]
    b1 = p[:, _COL_B1:_COL_B1 + 1]            # (Hp, 1)
    w2 = p[:, _COL_W2:_COL_W2 + 1]            # (Hp, 1)  lin2.weight
    b2 = p[0:1, _COL_B2:_COL_B2 + 1]          # (1, 1)

    xy = inp_ref[...]                         # (2, tb) f32, batch along lanes
    x = xy[0:1, :]                            # input[:, 0]   -> (1, tb)
    y = xy[1:2, :]                            # input[:, -1]  -> (1, tb)

    # polar transform (VPU + EUP), lane-dense
    r = jnp.sqrt(x * x + y * y)               # (1, tb)
    a = jnp.arctan2(y, x)                     # (1, tb)

    # lin1 + tanh as broadcast FMAs: (Hp,1) x (1,tb) -> (Hp, tb).  Padded
    # hidden rows have zero weights/bias -> tanh(0)=0 and are zeroed by w2.
    h = jnp.tanh(r * w1r + a * w1a + b1)      # (Hp, tb)

    # lin2 + sigmoid as a sublane (XLU) reduce -- no N=1 MXU pass
    o = jnp.sum(h * w2, axis=0, keepdims=True) + b2     # (1, tb)
    out_ref[...] = jax.nn.sigmoid(o)          # lane-dense store


def polarnet_forward(inp, w1, b1, w2, b2, *, max_tile_b=16384, min_grid_steps=2):
    """inp: (B, 2).  w1: (2, H) = lin1.weight.T, b1: (1, H),
    w2: (H, 1) = lin2.weight.T, b2: (1, 1).  Returns (B, 1)."""
    B = inp.shape[0]
    H = w1.shape[1]
    assert inp.shape[1] == INPUT_NODE == 2

    # --- pack all parameters into one (Hp, 128) f32 slab -> single DMA ---
    Hp = max(8, _round_up(H, 8))
    slab = jnp.zeros((Hp, 128), jnp.float32)
    slab = slab.at[:H, _COL_W1R].set(w1[0, :].astype(jnp.float32))
    slab = slab.at[:H, _COL_W1A].set(w1[1, :].astype(jnp.float32))
    slab = slab.at[:H, _COL_B1].set(b1.reshape(-1).astype(jnp.float32))
    slab = slab.at[:H, _COL_W2].set(w2[:, 0].astype(jnp.float32))
    slab = slab.at[0, _COL_B2].set(b2.reshape(-1)[0].astype(jnp.float32))

    # --- batch tiling: lane axis, multiple of 128, big tiles to amortize the
    # per-step overhead, but capped so large batches keep >=min_grid_steps
    # steps for v7x megacore sharding.
    b_aligned = _round_up(max(B, 1), 128)
    tb = min(max_tile_b,
             max(128, _round_up(pl.cdiv(b_aligned, min_grid_steps), 128)))
    pad_b = _round_up(b_aligned, tb)
    grid_steps = pad_b // tb

    # Batch along lanes: transpose to (2, B) then pad lanes.  Padded columns
    # give sqrt(0)=0, atan2(0,0)=0 (defined, no NaNs) and are sliced off.
    inp_t = jnp.transpose(inp.astype(jnp.float32))            # (2, B)
    if pad_b != B:
        inp_t = jnp.pad(inp_t, ((0, 0), (0, pad_b - B)))

    cost = pl.CostEstimate(
        flops=pad_b * (6 * H + 10),                 # layer-1 FMAs + layer-2 reduce
        transcendentals=pad_b * (H + 3),            # tanh*H + sqrt + atan2 + sigmoid
        bytes_accessed=inp_t.size * 4 + slab.size * 4 + pad_b * 4,
    )

    out = pl.pallas_call(
        polarnet_kernel,
        out_shape=jax.ShapeDtypeStruct((1, pad_b), jnp.float32),
        grid=(grid_steps,),
        in_specs=[
            pl.BlockSpec((Hp, 128), lambda i: (0, 0)),      # param slab (resident)
            pl.BlockSpec((2, tb), lambda i: (0, i)),        # batch tile in (lanes)
        ],
        out_specs=pl.BlockSpec((1, tb), lambda i: (0, i)),  # lane-dense out
        compiler_params=pltpu.CompilerParams(
            dimension_semantics=("parallel",),              # batch tiles independent
        ),
        cost_estimate=cost,
    )(slab, inp_t)

    return out[0, :B].reshape(B, OUTPUT_NODE)


def reference_forward(inp, w1, b1, w2, b2):
    x = inp[:, 0:1]
    y = inp[:, 1:2]
    feats = jnp.concatenate([jnp.sqrt(x * x + y * y), jnp.arctan2(y, x)], axis=1)
    h = jnp.tanh(feats @ w1 + b1)
    return jax.nn.sigmoid(h @ w2 + b2)


if __name__ == "__main__":
    key = jax.random.PRNGKey(0)
    k_in, k_in2, k_w1, k_b1, k_w2, k_b2 = jax.random.split(key, 6)

    # Deterministic synthetic parameters (PyTorch nn.Linear-style uniform init),
    # stored pre-transposed to (in, out).
    bound1 = 1.0 / (INPUT_NODE ** 0.5)
    bound2 = 1.0 / (NUM_HID ** 0.5)
    w1 = jax.random.uniform(k_w1, (INPUT_NODE, NUM_HID), jnp.float32,
                            minval=-bound1, maxval=bound1)   # lin1.weight.T
    b1 = jax.random.uniform(k_b1, (1, NUM_HID), jnp.float32,
                            minval=-bound1, maxval=bound1)
    w2 = jax.random.uniform(k_w2, (NUM_HID, OUTPUT_NODE), jnp.float32,
                            minval=-bound2, maxval=bound2)   # lin2.weight.T
    b2 = jax.random.uniform(k_b2, (1, OUTPUT_NODE), jnp.float32,
                            minval=-bound2, maxval=bound2)

    # Small-batch check (single grid step; launch-overhead dominated anyway).
    inp = jax.random.normal(k_in, (BATCH, INPUT_NODE), jnp.float32)
    out = jax.block_until_ready(polarnet_forward(inp, w1, b1, w2, b2))
    ref = reference_forward(inp, w1, b1, w2, b2)
    assert out.shape == (BATCH, OUTPUT_NODE)
    assert jnp.allclose(out, ref, atol=1e-5, rtol=1e-5)

    # Multi-step-grid / padded-batch check (forces 2 grid steps).
    inp_big = jax.random.normal(k_in2, (300, INPUT_NODE), jnp.float32)
    out_big = jax.block_until_ready(
        polarnet_forward(inp_big, w1, b1, w2, b2, max_tile_b=256))
    ref_big = reference_forward(inp_big, w1, b1, w2, b2)
    assert out_big.shape == (300, OUTPUT_NODE)
    assert jnp.allclose(out_big, ref_big, atol=1e-5, rtol=1e-5)

    print("KERNEL_OK")
</pallas_src>

<mosaic_0001>
module attributes {stable_mosaic.version = 11 : i64} {
  func.func @polarnet_kernel(%arg0: i32, %arg1: memref<32x128xf32, #tpu.memory_space<vmem>>, %arg2: memref<2x128xf32, #tpu.memory_space<vmem>>, %arg3: memref<1x128xf32, #tpu.memory_space<vmem>>) attributes {dimension_semantics = [#tpu.dimension_semantics<parallel>], iteration_bounds = array<i64: 1>, scalar_prefetch = 0 : i64, scratch_operands = 0 : i64, tpu.core_type = #tpu.core_type<tc>, window_params = [{pipeline_mode = #tpu.pipeline_mode<synchronous>, transform_indices = @transform_0, window_bounds = array<i64: 32, 128>}, {transform_indices = @transform_1, window_bounds = array<i64: 2, 128>}, {transform_indices = @transform_2, window_bounds = array<i64: 1, 128>}]} {
    %c0 = arith.constant 0 : index
    %c0_0 = arith.constant 0 : index
    %0 = vector.load %arg1[%c0, %c0_0] : memref<32x128xf32, #tpu.memory_space<vmem>>, vector<32x128xf32>
    %1 = vector.extract_strided_slice %0 {offsets = [0, 0], sizes = [32, 1], strides = [1, 1]} : vector<32x128xf32> to vector<32x1xf32>
    %2 = vector.extract_strided_slice %0 {offsets = [0, 1], sizes = [32, 1], strides = [1, 1]} : vector<32x128xf32> to vector<32x1xf32>
    %3 = vector.extract_strided_slice %0 {offsets = [0, 2], sizes = [32, 1], strides = [1, 1]} : vector<32x128xf32> to vector<32x1xf32>
    %4 = vector.extract_strided_slice %0 {offsets = [0, 3], sizes = [32, 1], strides = [1, 1]} : vector<32x128xf32> to vector<32x1xf32>
    %5 = vector.extract_strided_slice %0 {offsets = [0, 4], sizes = [1, 1], strides = [1, 1]} : vector<32x128xf32> to vector<1x1xf32>
    %c0_1 = arith.constant 0 : index
    %c0_2 = arith.constant 0 : index
    %6 = vector.load %arg2[%c0_1, %c0_2] : memref<2x128xf32, #tpu.memory_space<vmem>>, vector<2x128xf32>
    %7 = vector.extract_strided_slice %6 {offsets = [0, 0], sizes = [1, 128], strides = [1, 1]} : vector<2x128xf32> to vector<1x128xf32>
    %8 = vector.extract_strided_slice %6 {offsets = [1, 0], sizes = [1, 128], strides = [1, 1]} : vector<2x128xf32> to vector<1x128xf32>
    %9 = arith.mulf %7, %7 : vector<1x128xf32>
    %10 = arith.mulf %8, %8 : vector<1x128xf32>
    %11 = arith.addf %9, %10 : vector<1x128xf32>
    %12 = math.sqrt %11 : vector<1x128xf32>
    %13 = math.atan2 %8, %7 : vector<1x128xf32>
    %14 = vector.broadcast %12 : vector<1x128xf32> to vector<32x128xf32>
    %15 = vector.broadcast %1 : vector<32x1xf32> to vector<32x128xf32>
    %16 = arith.mulf %14, %15 : vector<32x128xf32>
    %17 = vector.broadcast %13 : vector<1x128xf32> to vector<32x128xf32>
    %18 = vector.broadcast %2 : vector<32x1xf32> to vector<32x128xf32>
    %19 = arith.mulf %17, %18 : vector<32x128xf32>
    %20 = arith.addf %16, %19 : vector<32x128xf32>
    %21 = vector.broadcast %3 : vector<32x1xf32> to vector<32x128xf32>
    %22 = arith.addf %20, %21 : vector<32x128xf32>
    %23 = math.tanh %22 : vector<32x128xf32>
    %24 = vector.broadcast %4 : vector<32x1xf32> to vector<32x128xf32>
    %25 = arith.mulf %23, %24 : vector<32x128xf32>
    %cst = arith.constant dense<0.000000e+00> : vector<128xf32>
    %26 = vector.multi_reduction <add>, %25, %cst [0] : vector<32x128xf32> to vector<128xf32>
    %27 = vector.shape_cast %26 : vector<128xf32> to vector<1x128xf32>
    %28 = vector.broadcast %5 : vector<1x1xf32> to vector<1x128xf32>
    %29 = arith.addf %27, %28 : vector<1x128xf32>
    %30 = arith.negf %29 : vector<1x128xf32>
    %31 = math.exp %30 : vector<1x128xf32>
    %cst_3 = arith.constant 1.000000e+00 : f32
    %32 = vector.broadcast %cst_3 : f32 to vector<1x128xf32>
    %33 = arith.addf %32, %31 : vector<1x128xf32>
    %34 = arith.divf %32, %33 : vector<1x128xf32>
    %c0_4 = arith.constant 0 : index
    %c0_5 = arith.constant 0 : index
    %35 = vector.load %arg3[%c0_4, %c0_5] : memref<1x128xf32, #tpu.memory_space<vmem>>, vector<1x128xf32>
    tpu.vector_store %arg3[%c0_4, %c0_5], %34 {strides = array<i32>} : memref<1x128xf32, #tpu.memory_space<vmem>>, vector<1x128xf32>,
    return
  }
  func.func @transform_0(%arg0: i32) -> (i32, i32) {
    %c0_i32 = arith.constant 0 : i32
    %c0_i32_0 = arith.constant 0 : i32
    %c0_i32_1 = arith.constant 0 : i32
    return %c0_i32, %c0_i32_0 : i32, i32
  }
  func.func @transform_1(%arg0: i32) -> (i32, i32) {
    %c0_i32 = arith.constant 0 : i32
    %c0_i32_0 = arith.constant 0 : i32
    return %c0_i32, %arg0 : i32, i32
  }
  func.func @transform_2(%arg0: i32) -> (i32, i32) {
    %c0_i32 = arith.constant 0 : i32
    %c0_i32_0 = arith.constant 0 : i32
    return %c0_i32, %arg0 : i32, i32
  }
}

</mosaic_0001>

<llo_original>
// kernel: tpu_custom_call.1
$region0: #{tpu_custom_call.1}
  #allocation0 [shape = 'u32[]', space=smem, size = 0x4, offset = 0x4, fixed_abs, tag = 'smem constant byte address 0x4 - core index']
  #allocation1 [shape = 'u32[72,128]{1,0:T(1,128)}', space=vmem, size = 0x9000, scoped, tag = 'internal scratch']
  %s0 = inlined_call_operand.hbm [shape: f32[32,128], index: 0, kind: input, shape index: {}]
  %s1 = inlined_call_operand.hbm [shape: f32[2,128], index: 1, kind: input, shape index: {}]
  %s2 = inlined_call_operand.hbm [shape: f32[1,128], index: 2, kind: output, shape index: {}]
  %s3 = sld [smem:[#allocation0]]
  $region26: #{tpu_custom_call.1} parent=0
    _
  %s5 = ssub.s32 1, %s3
  %s6 = scalar_select 0, %s5, %s3
  $region1: #{tpu_custom_call.1} parent=0
    #allocation2 [shape = 'u8[16384]{0}', space=vmem, size = 0x4000, scoped, tag = 'input window, operand 0, single buffered']
    #allocation3 [shape = 's32[1]{0}', space=sflag, size = 0x4, scoped, tag = 'scoped memory for tpu_custom_call.1']
    #allocation4 [shape = 's32[1]{0}', space=sflag, size = 0x4, scoped, tag = 'scoped memory for tpu_custom_call.1']
    #allocation5 [shape = 'u8[1024]{0}', space=vmem, size = 0x400, scoped, tag = 'input window, operand 1, single buffered']
    #allocation6 [shape = 's32[1]{0}', space=sflag, size = 0x4, scoped, tag = 'scoped memory for tpu_custom_call.1']
    #allocation7 [shape = 'u8[512]{0}', space=vmem, size = 0x400, scoped, tag = 'output window, operand 0, single buffered']
    %7 = vsyncpa [#allocation3], 0
    %8 = vsyncpa [#allocation6], 0
    %9 = vsyncpa [#allocation4], 0
    // Predicated region
    $region2: #{tpu_custom_call.1} parent=1 // pred_check
      _
    $region3: #{tpu_custom_call.1} parent=1 // pred_check_branch
      %11 = sbr.rel (0) target = $region5
    $region4: #{tpu_custom_call.1} parent=1 // pred_region
      %13 = vsyncadd [#allocation3], 0
      %s14 = sshll.u32 %s0, 4
      %s15 = int_to_ptr.hbm [resolvable:$true] %s14
      %s16 = sshll.u32 [#allocation2], 4
      %s17 = int_to_ptr.vmem [resolvable:$true] %s16
      %22 = dma.hbm_to_vmem [thread:$0]  %s15, 512, %s17, [#allocation3], 128, 128, 8
    $region5: #{tpu_custom_call.1} parent=1 // pred_fallthru
      _
    // Predicated region
    $region6: #{tpu_custom_call.1} parent=1 // pred_check
      _
    $region7: #{tpu_custom_call.1} parent=1 // pred_check_branch
      %24 = sbr.rel (0) target = $region9
    $region8: #{tpu_custom_call.1} parent=1 // pred_region
      %26 = vsyncadd [#allocation6], 0
      %s28 = sshll.u32 %s1, 4
      %s29 = int_to_ptr.hbm [resolvable:$true] %s28
      %s30 = sshll.u32 [#allocation5], 4
      %s31 = int_to_ptr.vmem [resolvable:$true] %s30
      %33 = dma.hbm_to_vmem [thread:$0]  %s29, 32, %s31, [#allocation6]
    $region9: #{tpu_custom_call.1} parent=1 // pred_fallthru
      _
    // Predicated region
    $region10: #{tpu_custom_call.1} parent=1 // pred_check
      _
    $region11: #{tpu_custom_call.1} parent=1 // pred_check_branch
      %35 = sbr.rel (0) target = $region13
    $region12: #{tpu_custom_call.1} parent=1 // pred_region
      %37 = dma.done [#allocation3], 512
    $region13: #{tpu_custom_call.1} parent=1 // pred_fallthru
      _
    // Predicated region
    $region14: #{tpu_custom_call.1} parent=1 // pred_check
      _
    $region15: #{tpu_custom_call.1} parent=1 // pred_check_branch
      %39 = sbr.rel (0) target = $region17
    $region16: #{tpu_custom_call.1} parent=1 // pred_region
      %41 = dma.done [#allocation6], 32
    $region17: #{tpu_custom_call.1} parent=1 // pred_fallthru
      _
    %v42 = vld [vmem:[#allocation2] sm:$0xff]
    %v43 = vld [vmem:[#allocation2 + $0x8] sm:$0xff]
    %v44 = vld [vmem:[#allocation2 + $0x10] sm:$0xff]
    %v45 = vld [vmem:[#allocation2 + $0x18] sm:$0xff]
    %v46 = vld [vmem:[#allocation5] sm:$0x3]
    %v47 = vmul.f32 %v46, %v46
    %v49 = vrot.slane %v47, 1
    %v51 = vadd.f32 %v47, %v49
    %v52 = vrsqrt.pop %v51
    %v53 = vmul.f32 %v52, %v51
    %v54 = vmul.f32 %v53, %v52
    %v55 = vmul.f32 0.5, %v54
    %v56 = vsub.f32 1.5, %v55
    %v57 = vmul.f32 %v52, %v56
    %v58 = vmul.f32 %v51, %v57
    %vm59 = vcmp.eq.f32.partialorder %v51, inf
    %v60 = vsel %vm59, %v51, %v58
    %vm61 = vcmp.eq.f32.partialorder %v51, 0.0
    %v62 = vand.u32 %v51, 2147483648
    %v63 = vsel %vm61, %v62, %v60
    %v65 = vrot.slane %v46, 7
    %v67 = vand.u32 2147483647, %v65
    %v68 = vand.u32 2147483647, %v46
    %v69 = vmin.f32 %v67, %v68
    %v70 = vmax.f32 %v67, %v68
    %v71 = vrcp.pop %v70
    %v72 = vmul.f32 %v70, %v71
    %v73 = vsub.f32 1.0, %v72
    %v74 = vmul.f32 %v71, %v73
    %v75 = vadd.f32 %v71, %v74
    %vm76 = vweird.f32 %v70
    %vm77 = vweird.f32 %v71
    %vm78 = vmor %vm76, %vm77
    %v79 = vsel %vm78, %v71, %v75
    %v80 = vand.u32 2147483647, %v70
    %vm81 = vcmp.eq.f32.partialorder %v80, 8.507059e+37
    %v82 = vand.u32 %v70, 2147483648
    %v83 = vor.u32 1.1754944e-38, %v82
    %v84 = vsel %vm81, %v83, %v79
    %v85 = vmul.f32 %v69, %v84
    %v86 = vmul.f32 %v85, %v85
    %v87 = vmul.f32 0.002785687, %v86
    %v88 = vadd.f32 %v87, -0.015866
    %v89 = vmul.f32 %v88, %v86
    %v90 = vadd.f32 %v89, 0.04247222
    %v91 = vmul.f32 %v90, %v86
    %v92 = vadd.f32 %v91, -0.074975304
    %v93 = vmul.f32 %v92, %v86
    %v94 = vadd.f32 %v93, 0.1064488
    %v95 = vmul.f32 %v94, %v86
    %v96 = vadd.f32 %v95, -0.14207031
    %v97 = vmul.f32 %v96, %v86
    %v98 = vadd.f32 %v97, 0.19993454
    %v99 = vmul.f32 %v98, %v86
    %v100 = vadd.f32 %v99, -0.33333147
    %v101 = vmul.f32 %v100, %v86
    %v102 = vmul.f32 %v101, %v85
    %v103 = vadd.f32 %v102, %v85
    %vm104 = vcmp.gt.f32.partialorder %v68, %v67
    %v105 = vsub.f32 1.5707964, %v103
    %v106 = vsel %vm104, %v105, %v103
    %vm107 = vcmp.lt.f32.partialorder %v65, 0.0
    %v108 = vsub.f32 3.1415927, %v106
    %v109 = vsel %vm107, %v108, %v106
    %vm110 = vcmp.lt.s32.totalorder %v65, 0
    %v111 = vsel %vm110, 3.1415927, 0.0
    %vm112 = vcmp.eq.f32.partialorder %v46, 0.0
    %v113 = vsel %vm112, %v111, %v109
    %vm114 = vcmp.ne.f32.partialorder %v65, %v65
    %vm115 = vcmp.ne.f32.partialorder %v46, %v46
    %vm116 = vmor %vm114, %vm115
    %v117 = vsel %vm116, nan, %v113
    %vm118 = vcmp.lt.f32.partialorder %v65, 0.0
    %v119 = vsel %vm118, 2.3561945, 0.7853982
    %vm120 = vcmp.eq.s32.totalorder %v67, inf
    %vm121 = vcmp.eq.s32.totalorder %v68, inf
    %vm122 = vmand %vm120, %vm121
    %v123 = vsel %vm122, %v119, %v117
    %v124 = vand.u32 2147483647, %v123
    %v125 = vand.u32 %v46, 2147483648
    %v126 = vor.u32 %v124, %v125
    %v127 = vperm.slane %v63, 0
    %129 = vset.pattern.permute.xlu0 0
    %130 = vperm.xlu0 %129, %v42
    %v131 = vpop.permute.xlu0 %130
    %134 = vset.pattern.permute.xlu0 0
    %135 = vperm.xlu0 %134, %v43
    %v136 = vpop.permute.xlu0 %135
    %139 = vset.pattern.permute.xlu0 0
    %140 = vperm.xlu0 %139, %v44
    %v141 = vpop.permute.xlu0 %140
    %144 = vset.pattern.permute.xlu0 0
    %145 = vperm.xlu0 %144, %v45
    %v146 = vpop.permute.xlu0 %145
    %v148 = vmul.f32 %v127, %v131
    %v149 = vmul.f32 %v127, %v136
    %v150 = vmul.f32 %v127, %v141
    %v151 = vmul.f32 %v127, %v146
    %v152 = vperm.slane %v126, 1
    %153 = vset.pattern.permute.xlu0 1
    %154 = vperm.xlu0 %153, %v42
    %v155 = vpop.permute.xlu0 %154
    %157 = vset.pattern.permute.xlu0 1
    %158 = vperm.xlu0 %157, %v43
    %v159 = vpop.permute.xlu0 %158
    %161 = vset.pattern.permute.xlu0 1
    %162 = vperm.xlu0 %161, %v44
    %v163 = vpop.permute.xlu0 %162
    %165 = vset.pattern.permute.xlu0 1
    %166 = vperm.xlu0 %165, %v45
    %v167 = vpop.permute.xlu0 %166
    %v169 = vmul.f32 %v152, %v155
    %v170 = vmul.f32 %v152, %v159
    %v171 = vmul.f32 %v152, %v163
    %v172 = vmul.f32 %v152, %v167
    %v173 = vadd.f32 %v148, %v169
    %v174 = vadd.f32 %v149, %v170
    %v175 = vadd.f32 %v150, %v171
    %v176 = vadd.f32 %v151, %v172
    %177 = vset.pattern.permute.xlu0 2
    %178 = vperm.xlu0 %177, %v42
    %v179 = vpop.permute.xlu0 %178
    %181 = vset.pattern.permute.xlu0 2
    %182 = vperm.xlu0 %181, %v43
    %v183 = vpop.permute.xlu0 %182
    %185 = vset.pattern.permute.xlu0 2
    %186 = vperm.xlu0 %185, %v44
    %v187 = vpop.permute.xlu0 %186
    %189 = vset.pattern.permute.xlu0 2
    %190 = vperm.xlu0 %189, %v45
    %v191 = vpop.permute.xlu0 %190
    %v193 = vadd.f32 %v173, %v179
    %v194 = vadd.f32 %v174, %v183
    %v195 = vadd.f32 %v175, %v187
    %v196 = vadd.f32 %v176, %v191
    %v197 = vtanh.pop %v193
    %v198 = vtanh.pop %v194
    %v199 = vtanh.pop %v195
    %v200 = vtanh.pop %v196
    %201 = vset.pattern.permute.xlu0 3
    %202 = vperm.xlu0 %201, %v42
    %v203 = vpop.permute.xlu0 %202
    %205 = vset.pattern.permute.xlu0 3
    %206 = vperm.xlu0 %205, %v43
    %v207 = vpop.permute.xlu0 %206
    %209 = vset.pattern.permute.xlu0 3
    %210 = vperm.xlu0 %209, %v44
    %v211 = vpop.permute.xlu0 %210
    %213 = vset.pattern.permute.xlu0 3
    %214 = vperm.xlu0 %213, %v45
    %v215 = vpop.permute.xlu0 %214
    %v217 = vmul.f32 %v197, %v203
    %v218 = vmul.f32 %v198, %v207
    %v219 = vmul.f32 %v199, %v211
    %v220 = vmul.f32 %v200, %v215
    %v221 = vadd.f32 %v217, %v218
    %v222 = vadd.f32 %v221, %v219
    %v223 = vadd.f32 %v222, %v220
    %v224 = vrot.slane %v223, 4
    %v225 = vadd.f32 %v223, %v224
    %v226 = vrot.slane %v225, 2
    %v227 = vadd.f32 %v225, %v226
    %v228 = vrot.slane %v227, 1
    %v229 = vadd.f32 %v227, %v228
    %230 = vset.pattern.permute.xlu0 4
    %231 = vperm.xlu0 %230, %v42
    %v232 = vpop.permute.xlu0 %231
    %v234 = vadd.f32 %v229, %v232
    %v235 = vxor.u32 %v234, 2147483648
    %v236 = vmul.f32 %v235, 1.442695
    %v237 = vpow.pop %v236
    %v238 = vadd.f32 %v237, 1.0
    %v239 = vrcp.pop %v238
    %v240 = vmul.f32 %v238, %v239
    %v241 = vsub.f32 1.0, %v240
    %v242 = vmul.f32 %v239, %v241
    %v243 = vadd.f32 %v239, %v242
    %vm244 = vweird.f32 %v238
    %vm245 = vweird.f32 %v239
    %vm246 = vmor %vm244, %vm245
    %v247 = vsel %vm246, %v239, %v243
    %v248 = vand.u32 2147483647, %v238
    %vm249 = vcmp.eq.f32.partialorder %v248, 8.507059e+37
    %v250 = vand.u32 %v238, 2147483648
    %v251 = vor.u32 1.1754944e-38, %v250
    %v252 = vsel %vm249, %v251, %v247
    %v253 = vmul.f32 1.0, %v252
    %254 = vst [vmem:[#allocation7] sm:$0x1] %v253
    // Predicated region
    $region18: #{tpu_custom_call.1} parent=1 // pred_check
      _
    $region19: #{tpu_custom_call.1} parent=1 // pred_check_branch
      %256 = sbr.rel (0) target = $region21
    $region20: #{tpu_custom_call.1} parent=1 // pred_region
      %258 = vsyncadd [#allocation4], 0
      %s260 = sshll.u32 [#allocation7], 4
      %s261 = int_to_ptr.vmem [resolvable:$true] %s260
      %s262 = sshll.u32 %s2, 4
      %s263 = int_to_ptr.hbm [resolvable:$true] %s262
      %265 = dma.vmem_to_hbm [thread:$0]  %s261, 16, %s263, [#allocation4]
    $region21: #{tpu_custom_call.1} parent=1 // pred_fallthru
      _
    // Predicated region
    $region22: #{tpu_custom_call.1} parent=1 // pred_check
      _
    $region23: #{tpu_custom_call.1} parent=1 // pred_check_branch
      %267 = sbr.rel (0) target = $region25
    $region24: #{tpu_custom_call.1} parent=1 // pred_region
      %269 = dma.done [#allocation4], 16
    $region25: #{tpu_custom_call.1} parent=1 // pred_fallthru
      _
    %270 = vsyncpa [#allocation3], 1
    %271 = vsyncpa [#allocation6], 1
    %272 = vsyncpa [#allocation4], 1

</llo_original>
